<compile_context>
chip_gen: v5e
topology: v5e:2x2
jax: 0.10.0
libtpu: 0.0.40
codegen_flags: <defaults>
</compile_context>

<pallas_src>
import jax
import jax.numpy as jnp
from jax.experimental import pallas as pl
from jax.experimental.pallas import tpu as pltpu

BN_EPS = 1e-5

# Tap order for the stride-2 input conv (phase-decomposed im2col).  The first
# four taps are exactly the four 2x2-maxpool phases, so the pool is a max over
# im2col rows [0 : 4*Cin).
_TAPS_S2 = ((1, 1), (1, 2), (2, 1), (2, 2),
            (0, 0), (0, 1), (0, 2), (1, 0), (2, 0))


# ---------------------------------------------------------------------------
# Fused forward
# ---------------------------------------------------------------------------
def _basic_tree_forward(x_nchw, params):
    """BasicTree(levels=1, stride=2, level_root=True, linear_root=True)."""
    N, Cin, H, W = x_nchw.shape
    assert H % 2 == 0 and W % 2 == 0            # matches the PyTorch assert
    Cout = params["tree1"]["w1"].shape[0]
    Ho, Wo = H // 2, W // 2
    M = N * Ho * Wo                             # batch*spatial -> lane axis
    Kc = max(9 * Cin, 9 * Cout, 2 * Cout + Cin)  # padded K of the weight slab
    f32, bf16 = jnp.float32, jnp.bfloat16

    # ---- trace-time prep: fold BN scale into conv weights (bf16) -----------
    def fold3(w, scale, taps=None):             # (Cout,C,3,3) -> (Cout, 9*C)
        wt = jnp.transpose(w, (0, 2, 3, 1))     # (Cout,3,3,C)
        if taps is None:                        # column index = (kh*3+kw)*C + c
            wt = wt.reshape(w.shape[0], 9, w.shape[1])
        else:                                   # column index = tap*C + c
            wt = jnp.stack([wt[:, kh, kw, :] for kh, kw in taps], axis=1)
        return (wt.reshape(w.shape[0], -1) * scale[:, None]).astype(bf16)

    def fold1(w, scale):                        # (Cout,K,1,1) -> (Cout, K)
        return (w[:, :, 0, 0] * scale[:, None]).astype(bf16)

    p1, p2 = params["tree1"], params["tree2"]
    w11 = fold3(p1["w1"], p1["s1"], _TAPS_S2)   # (Cout, 9*Cin)
    w12 = fold3(p1["w2"], p1["s2"])             # (Cout, 9*Cout)
    w21 = fold3(p2["w1"], p2["s1"])
    w22 = fold3(p2["w2"], p2["s2"])
    wp = fold1(params["proj_w"], params["proj_s"])      # (Cout, Cin)
    wr = fold1(params["root_w"], params["root_s"])      # (Cout, 2*Cout+Cin)

    def padk(w):                                # pad K so all blocks stack
        return jnp.pad(w, ((0, 0), (0, Kc - w.shape[1])))

    # ONE bf16 weight slab (6 row-blocks of Cout rows) + ONE f32 bias slab.
    w_slab = jnp.concatenate(
        [padk(w11), padk(w12), padk(w21), padk(w22), padk(wp), padk(wr)],
        axis=0)                                             # (6*Cout, Kc)
    b_slab = jnp.stack([p1["b1"], p1["b2"], p2["b1"], p2["b2"],
                        params["proj_b"], params["root_b"]],
                       axis=1).astype(f32)                  # (Cout, 6)

    # ---- layout plumbing: bf16 input -> phase-decomposed im2col (9*Cin, M) --
    # im_in[t*Cin + c, n*Ho*Wo + i*Wo + j] = xpad[n, c, 2*i + kh_t, 2*j + kw_t]
    xp = jnp.pad(x_nchw.astype(bf16), ((0, 0), (0, 0), (1, 1), (1, 1)))
    cols = []
    for kh, kw in _TAPS_S2:
        tap = xp[:, :, kh:kh + 2 * Ho:2, kw:kw + 2 * Wo:2]  # (N,Cin,Ho,Wo)
        cols.append(jnp.transpose(tap, (1, 0, 2, 3)).reshape(Cin, M))
    im_in = jnp.concatenate(cols, axis=0)                   # (9*Cin, M)

    # 0/1 halo masks for the stride-1 3x3 convs (one row per non-center tap,
    # kh-major order).  Lane m = n*Ho*Wo + i*Wo + j is valid for tap (dh,dw)
    # iff (i+dh, j+dw) stays inside the Ho x Wo image (conv zero padding).
    lane = jnp.arange(M, dtype=jnp.int32)
    ri, cj = (lane // Wo) % Ho, lane % Wo
    mrows = []
    for kh in range(3):
        for kw in range(3):
            dh, dw = kh - 1, kw - 1
            if dh == 0 and dw == 0:
                continue
            ok = ((ri + dh >= 0) & (ri + dh < Ho)
                  & (cj + dw >= 0) & (cj + dw < Wo))
            mrows.append(ok.astype(f32))
    halo_mask = jnp.stack(mrows, axis=0)                    # (8, M)

    # ---- the single fused kernel -------------------------------------------
    def kernel(im_ref, hm_ref, w_ref, b_ref, out_ref):
        im = im_ref[...]                        # (9*Cin, M) bf16
        hm = hm_ref[...]                        # (8, M)     f32 0/1 masks

        def bias(t):                            # (Cout, 1), broadcasts on lanes
            return b_ref[:, t:t + 1]

        # -- 2x2 maxpool: max over the 4 pool-phase row blocks of the im2col --
        pool = im[0:4 * Cin].astype(f32)        # (4*Cin, M)
        bot = jnp.maximum(
            jnp.maximum(pool[0 * Cin:1 * Cin], pool[1 * Cin:2 * Cin]),
            jnp.maximum(pool[2 * Cin:3 * Cin], pool[3 * Cin:4 * Cin]))  # (Cin,M)
        bot_bf = bot.astype(bf16)

        # -- 1x1 projection + BN: residual for tree1 --
        resid = jnp.dot(w_ref[4 * Cout:5 * Cout, :Cin], bot_bf,
                        preferred_element_type=f32) + bias(4)

        # -- tree1.conv1: 3x3 stride-2 conv + BN + ReLU (one fused-K dot) --
        y = jnp.maximum(
            jnp.dot(w_ref[0:Cout, :9 * Cin], im,
                    preferred_element_type=f32) + bias(0), 0.0)

        def conv3x3_s1(v, w_row, b_idx):
            """Stride-1 / pad-1 3x3 conv + BN bias on a (Cout, M) f32 slab.

            Taps are lane rolls of the flattened (n, i, j) axis; the 0/1 halo
            masks zero lanes whose (i+dh, j+dw) leaves the Ho x Wo image.
            One fused-K (9*Cout) MXU dot per conv.
            """
            patch, m_idx = [], 0
            for kh in range(3):
                for kw in range(3):
                    dh, dw = kh - 1, kw - 1
                    if dh == 0 and dw == 0:
                        patch.append(v)
                        continue
                    shifted = pltpu.roll(v, (-(dh * Wo + dw)) % M, 1)
                    patch.append(shifted * hm[m_idx:m_idx + 1, :])
                    m_idx += 1
            patch = jnp.concatenate(patch, axis=0).astype(bf16)  # (9*Cout, M)
            return jnp.dot(w_ref[w_row:w_row + Cout, :], patch,
                           preferred_element_type=f32) + bias(b_idx)

        # -- tree1: conv2-bn + residual + ReLU -> x1 --
        x1 = jnp.maximum(conv3x3_s1(y, Cout, 1) + resid, 0.0)
        # -- tree2: conv1-bn-relu, conv2-bn + x1, ReLU -> x2 --
        y2 = jnp.maximum(conv3x3_s1(x1, 2 * Cout, 2), 0.0)
        x2 = jnp.maximum(conv3x3_s1(y2, 3 * Cout, 3) + x1, 0.0)

        # -- linear root: 1x1 conv + BN over concat([x1, x2, bottom]) --
        rhs = jnp.concatenate([x1, x2, bot], axis=0).astype(bf16)  # (20, M)
        out_ref[...] = jnp.dot(w_ref[5 * Cout:6 * Cout, :2 * Cout + Cin], rhs,
                               preferred_element_type=f32) + bias(5)

    vmem = lambda: pl.BlockSpec(memory_space=pltpu.MemorySpace.VMEM)
    out2d = pl.pallas_call(
        kernel,
        out_shape=jax.ShapeDtypeStruct((Cout, M), f32),   # lane-dense (8, 128)
        in_specs=[vmem(), vmem(), vmem(), vmem()],
        out_specs=vmem(),
    )(im_in, halo_mask, w_slab, b_slab)

    # (Cout, M) lane-dense slab -> NCHW to match the PyTorch reference
    return out2d.reshape(Cout, N, Ho, Wo).transpose(1, 0, 2, 3)


basic_tree_forward = jax.jit(_basic_tree_forward)


# ---------------------------------------------------------------------------
# Deterministic parameter initialization (PyTorch-layout weights + BN stats)
# ---------------------------------------------------------------------------
def _conv_w(key, cout, cin, k):
    fan_in = cin * k * k
    return (jax.random.normal(key, (cout, cin, k, k), jnp.float32)
            * (2.0 / fan_in) ** 0.5)


def _bn(key, c):
    k1, k2, k3, k4 = jax.random.split(key, 4)
    gamma = 1.0 + 0.1 * jax.random.normal(k1, (c,), jnp.float32)
    beta = 0.1 * jax.random.normal(k2, (c,), jnp.float32)
    mean = 0.1 * jax.random.normal(k3, (c,), jnp.float32)
    var = 1.0 + 0.1 * jnp.abs(jax.random.normal(k4, (c,), jnp.float32))
    scale = gamma / jnp.sqrt(var + BN_EPS)
    bias = beta - mean * scale
    return scale, bias


def init_params(key, cin=4, cout=8):
    ks = jax.random.split(key, 12)
    root_dim = 2 * cout + cin  # level_root=True
    t1s1, t1b1 = _bn(ks[1], cout)
    t1s2, t1b2 = _bn(ks[3], cout)
    t2s1, t2b1 = _bn(ks[5], cout)
    t2s2, t2b2 = _bn(ks[7], cout)
    ps, pb = _bn(ks[9], cout)
    rs, rb = _bn(ks[11], cout)
    return {
        "tree1": {"w1": _conv_w(ks[0], cout, cin, 3), "s1": t1s1, "b1": t1b1,
                  "w2": _conv_w(ks[2], cout, cout, 3), "s2": t1s2, "b2": t1b2},
        "tree2": {"w1": _conv_w(ks[4], cout, cout, 3), "s1": t2s1, "b1": t2b1,
                  "w2": _conv_w(ks[6], cout, cout, 3), "s2": t2s2, "b2": t2b2},
        "proj_w": _conv_w(ks[8], cout, cin, 1), "proj_s": ps, "proj_b": pb,
        "root_w": _conv_w(ks[10], cout, root_dim, 1), "root_s": rs, "root_b": rb,
    }


# ---------------------------------------------------------------------------
if __name__ == "__main__":
    key = jax.random.PRNGKey(0)
    kx, kp = jax.random.split(key)

    N, CIN, H, W = 2, 4, 16, 16
    COUT = 8
    x = jax.random.normal(kx, (N, CIN, H, W), jnp.float32)   # NCHW like PyTorch
    params = init_params(kp, cin=CIN, cout=COUT)

    out = basic_tree_forward(x, params)
    out = jax.block_until_ready(out)

    assert out.shape == (N, COUT, H // 2, W // 2), out.shape
    assert jnp.all(jnp.isfinite(out))
    print("KERNEL_OK")
</pallas_src>

<mosaic_0001>
module attributes {stable_mosaic.version = 11 : i64} {
  func.func @kernel(%arg0: memref<36x128xbf16, #tpu.memory_space<vmem>>, %arg1: memref<8x128xf32, #tpu.memory_space<vmem>>, %arg2: memref<48x72xbf16, #tpu.memory_space<vmem>>, %arg3: memref<8x6xf32, #tpu.memory_space<vmem>>, %arg4: memref<8x128xf32, #tpu.memory_space<vmem>>) attributes {dimension_semantics = [], scalar_prefetch = 0 : i64, scratch_operands = 0 : i64, tpu.core_type = #tpu.core_type<tc>} {
    %c0 = arith.constant 0 : index
    %c0_0 = arith.constant 0 : index
    %0 = vector.load %arg0[%c0, %c0_0] : memref<36x128xbf16, #tpu.memory_space<vmem>>, vector<36x128xbf16>
    %c0_1 = arith.constant 0 : index
    %c0_2 = arith.constant 0 : index
    %1 = vector.load %arg1[%c0_1, %c0_2] : memref<8x128xf32, #tpu.memory_space<vmem>>, vector<8x128xf32>
    %2 = vector.extract_strided_slice %0 {offsets = [0, 0], sizes = [16, 128], strides = [1, 1]} : vector<36x128xbf16> to vector<16x128xbf16>
    %3 = arith.extf %2 : vector<16x128xbf16> to vector<16x128xf32>
    %4 = vector.extract_strided_slice %3 {offsets = [0, 0], sizes = [4, 128], strides = [1, 1]} : vector<16x128xf32> to vector<4x128xf32>
    %5 = vector.extract_strided_slice %3 {offsets = [4, 0], sizes = [4, 128], strides = [1, 1]} : vector<16x128xf32> to vector<4x128xf32>
    %6 = arith.maximumf %4, %5 : vector<4x128xf32>
    %7 = vector.extract_strided_slice %3 {offsets = [8, 0], sizes = [4, 128], strides = [1, 1]} : vector<16x128xf32> to vector<4x128xf32>
    %8 = vector.extract_strided_slice %3 {offsets = [12, 0], sizes = [4, 128], strides = [1, 1]} : vector<16x128xf32> to vector<4x128xf32>
    %9 = arith.maximumf %7, %8 : vector<4x128xf32>
    %10 = arith.maximumf %6, %9 : vector<4x128xf32>
    %11 = arith.truncf %10 : vector<4x128xf32> to vector<4x128xbf16>
    %c32 = arith.constant 32 : index
    %c0_3 = arith.constant 0 : index
    %12 = vector.load %arg2[%c32, %c0_3] : memref<48x72xbf16, #tpu.memory_space<vmem>>, vector<8x4xbf16>
    %cst = arith.constant dense<0.000000e+00> : vector<8x128xf32>
    %13 = tpu.matmul %12, %11, %cst {dimension_numbers = #tpu.dot_dimension_numbers<[1], [0], [0], [1], [0, 0, 1, 1], [], []>} : vector<8x4xbf16>, vector<4x128xbf16>, vector<8x128xf32> -> vector<8x128xf32>
    %c0_4 = arith.constant 0 : index
    %c4 = arith.constant 4 : index
    %14 = vector.load %arg3[%c0_4, %c4] : memref<8x6xf32, #tpu.memory_space<vmem>>, vector<8x1xf32>
    %15 = vector.broadcast %14 : vector<8x1xf32> to vector<8x128xf32>
    %16 = arith.addf %13, %15 : vector<8x128xf32>
    %c0_5 = arith.constant 0 : index
    %c0_6 = arith.constant 0 : index
    %17 = vector.load %arg2[%c0_5, %c0_6] : memref<48x72xbf16, #tpu.memory_space<vmem>>, vector<8x36xbf16>
    %cst_7 = arith.constant dense<0.000000e+00> : vector<8x128xf32>
    %18 = tpu.matmul %17, %0, %cst_7 {dimension_numbers = #tpu.dot_dimension_numbers<[1], [0], [0], [1], [0, 0, 1, 1], [], []>} : vector<8x36xbf16>, vector<36x128xbf16>, vector<8x128xf32> -> vector<8x128xf32>
    %c0_8 = arith.constant 0 : index
    %c0_9 = arith.constant 0 : index
    %19 = vector.load %arg3[%c0_8, %c0_9] : memref<8x6xf32, #tpu.memory_space<vmem>>, vector<8x1xf32>
    %20 = vector.broadcast %19 : vector<8x1xf32> to vector<8x128xf32>
    %21 = arith.addf %18, %20 : vector<8x128xf32>
    %cst_10 = arith.constant 0.000000e+00 : f32
    %22 = vector.broadcast %cst_10 : f32 to vector<8x128xf32>
    %23 = arith.maximumf %21, %22 : vector<8x128xf32>
    %c9_i32 = arith.constant 9 : i32
    %24 = tpu.dynamic_rotate %23 by %c9_i32 dim 1 : vector<8x128xf32>, i32 -> vector<8x128xf32>
    %25 = vector.extract_strided_slice %1 {offsets = [0, 0], sizes = [1, 128], strides = [1, 1]} : vector<8x128xf32> to vector<1x128xf32>
    %26 = vector.broadcast %25 : vector<1x128xf32> to vector<8x128xf32>
    %27 = arith.mulf %24, %26 : vector<8x128xf32>
    %c8_i32 = arith.constant 8 : i32
    %28 = tpu.dynamic_rotate %23 by %c8_i32 dim 1 : vector<8x128xf32>, i32 -> vector<8x128xf32>
    %29 = vector.extract_strided_slice %1 {offsets = [1, 0], sizes = [1, 128], strides = [1, 1]} : vector<8x128xf32> to vector<1x128xf32>
    %30 = vector.broadcast %29 : vector<1x128xf32> to vector<8x128xf32>
    %31 = arith.mulf %28, %30 : vector<8x128xf32>
    %c7_i32 = arith.constant 7 : i32
    %32 = tpu.dynamic_rotate %23 by %c7_i32 dim 1 : vector<8x128xf32>, i32 -> vector<8x128xf32>
    %33 = vector.extract_strided_slice %1 {offsets = [2, 0], sizes = [1, 128], strides = [1, 1]} : vector<8x128xf32> to vector<1x128xf32>
    %34 = vector.broadcast %33 : vector<1x128xf32> to vector<8x128xf32>
    %35 = arith.mulf %32, %34 : vector<8x128xf32>
    %c1_i32 = arith.constant 1 : i32
    %36 = tpu.dynamic_rotate %23 by %c1_i32 dim 1 : vector<8x128xf32>, i32 -> vector<8x128xf32>
    %37 = vector.extract_strided_slice %1 {offsets = [3, 0], sizes = [1, 128], strides = [1, 1]} : vector<8x128xf32> to vector<1x128xf32>
    %38 = vector.broadcast %37 : vector<1x128xf32> to vector<8x128xf32>
    %39 = arith.mulf %36, %38 : vector<8x128xf32>
    %c127_i32 = arith.constant 127 : i32
    %40 = tpu.dynamic_rotate %23 by %c127_i32 dim 1 : vector<8x128xf32>, i32 -> vector<8x128xf32>
    %41 = vector.extract_strided_slice %1 {offsets = [4, 0], sizes = [1, 128], strides = [1, 1]} : vector<8x128xf32> to vector<1x128xf32>
    %42 = vector.broadcast %41 : vector<1x128xf32> to vector<8x128xf32>
    %43 = arith.mulf %40, %42 : vector<8x128xf32>
    %c121_i32 = arith.constant 121 : i32
    %44 = tpu.dynamic_rotate %23 by %c121_i32 dim 1 : vector<8x128xf32>, i32 -> vector<8x128xf32>
    %45 = vector.extract_strided_slice %1 {offsets = [5, 0], sizes = [1, 128], strides = [1, 1]} : vector<8x128xf32> to vector<1x128xf32>
    %46 = vector.broadcast %45 : vector<1x128xf32> to vector<8x128xf32>
    %47 = arith.mulf %44, %46 : vector<8x128xf32>
    %c120_i32 = arith.constant 120 : i32
    %48 = tpu.dynamic_rotate %23 by %c120_i32 dim 1 : vector<8x128xf32>, i32 -> vector<8x128xf32>
    %49 = vector.extract_strided_slice %1 {offsets = [6, 0], sizes = [1, 128], strides = [1, 1]} : vector<8x128xf32> to vector<1x128xf32>
    %50 = vector.broadcast %49 : vector<1x128xf32> to vector<8x128xf32>
    %51 = arith.mulf %48, %50 : vector<8x128xf32>
    %c119_i32 = arith.constant 119 : i32
    %52 = tpu.dynamic_rotate %23 by %c119_i32 dim 1 : vector<8x128xf32>, i32 -> vector<8x128xf32>
    %53 = vector.extract_strided_slice %1 {offsets = [7, 0], sizes = [1, 128], strides = [1, 1]} : vector<8x128xf32> to vector<1x128xf32>
    %54 = vector.broadcast %53 : vector<1x128xf32> to vector<8x128xf32>
    %55 = arith.mulf %52, %54 : vector<8x128xf32>
    %56 = tpu.concatenate %27, %31, %35, %39, %23, %43, %47, %51, %55 in 0 : vector<8x128xf32>, vector<8x128xf32>, vector<8x128xf32>, vector<8x128xf32>, vector<8x128xf32>, vector<8x128xf32>, vector<8x128xf32>, vector<8x128xf32>, vector<8x128xf32> -> vector<72x128xf32>
    %57 = arith.truncf %56 : vector<72x128xf32> to vector<72x128xbf16>
    %c8 = arith.constant 8 : index
    %c0_11 = arith.constant 0 : index
    %58 = vector.load %arg2[%c8, %c0_11] : memref<48x72xbf16, #tpu.memory_space<vmem>>, vector<8x72xbf16>
    %cst_12 = arith.constant dense<0.000000e+00> : vector<8x128xf32>
    %59 = tpu.matmul %58, %57, %cst_12 {dimension_numbers = #tpu.dot_dimension_numbers<[1], [0], [0], [1], [0, 0, 1, 1], [], []>} : vector<8x72xbf16>, vector<72x128xbf16>, vector<8x128xf32> -> vector<8x128xf32>
    %c0_13 = arith.constant 0 : index
    %c1 = arith.constant 1 : index
    %60 = vector.load %arg3[%c0_13, %c1] : memref<8x6xf32, #tpu.memory_space<vmem>>, vector<8x1xf32>
    %61 = vector.broadcast %60 : vector<8x1xf32> to vector<8x128xf32>
    %62 = arith.addf %59, %61 : vector<8x128xf32>
    %63 = arith.addf %62, %16 : vector<8x128xf32>
    %cst_14 = arith.constant 0.000000e+00 : f32
    %64 = vector.broadcast %cst_14 : f32 to vector<8x128xf32>
    %65 = arith.maximumf %63, %64 : vector<8x128xf32>
    %c9_i32_15 = arith.constant 9 : i32
    %66 = tpu.dynamic_rotate %65 by %c9_i32_15 dim 1 : vector<8x128xf32>, i32 -> vector<8x128xf32>
    %67 = vector.extract_strided_slice %1 {offsets = [0, 0], sizes = [1, 128], strides = [1, 1]} : vector<8x128xf32> to vector<1x128xf32>
    %68 = vector.broadcast %67 : vector<1x128xf32> to vector<8x128xf32>
    %69 = arith.mulf %66, %68 : vector<8x128xf32>
    %c8_i32_16 = arith.constant 8 : i32
    %70 = tpu.dynamic_rotate %65 by %c8_i32_16 dim 1 : vector<8x128xf32>, i32 -> vector<8x128xf32>
    %71 = vector.extract_strided_slice %1 {offsets = [1, 0], sizes = [1, 128], strides = [1, 1]} : vector<8x128xf32> to vector<1x128xf32>
    %72 = vector.broadcast %71 : vector<1x128xf32> to vector<8x128xf32>
    %73 = arith.mulf %70, %72 : vector<8x128xf32>
    %c7_i32_17 = arith.constant 7 : i32
    %74 = tpu.dynamic_rotate %65 by %c7_i32_17 dim 1 : vector<8x128xf32>, i32 -> vector<8x128xf32>
    %75 = vector.extract_strided_slice %1 {offsets = [2, 0], sizes = [1, 128], strides = [1, 1]} : vector<8x128xf32> to vector<1x128xf32>
    %76 = vector.broadcast %75 : vector<1x128xf32> to vector<8x128xf32>
    %77 = arith.mulf %74, %76 : vector<8x128xf32>
    %c1_i32_18 = arith.constant 1 : i32
    %78 = tpu.dynamic_rotate %65 by %c1_i32_18 dim 1 : vector<8x128xf32>, i32 -> vector<8x128xf32>
    %79 = vector.extract_strided_slice %1 {offsets = [3, 0], sizes = [1, 128], strides = [1, 1]} : vector<8x128xf32> to vector<1x128xf32>
    %80 = vector.broadcast %79 : vector<1x128xf32> to vector<8x128xf32>
    %81 = arith.mulf %78, %80 : vector<8x128xf32>
    %c127_i32_19 = arith.constant 127 : i32
    %82 = tpu.dynamic_rotate %65 by %c127_i32_19 dim 1 : vector<8x128xf32>, i32 -> vector<8x128xf32>
    %83 = vector.extract_strided_slice %1 {offsets = [4, 0], sizes = [1, 128], strides = [1, 1]} : vector<8x128xf32> to vector<1x128xf32>
    %84 = vector.broadcast %83 : vector<1x128xf32> to vector<8x128xf32>
    %85 = arith.mulf %82, %84 : vector<8x128xf32>
    %c121_i32_20 = arith.constant 121 : i32
    %86 = tpu.dynamic_rotate %65 by %c121_i32_20 dim 1 : vector<8x128xf32>, i32 -> vector<8x128xf32>
    %87 = vector.extract_strided_slice %1 {offsets = [5, 0], sizes = [1, 128], strides = [1, 1]} : vector<8x128xf32> to vector<1x128xf32>
    %88 = vector.broadcast %87 : vector<1x128xf32> to vector<8x128xf32>
    %89 = arith.mulf %86, %88 : vector<8x128xf32>
    %c120_i32_21 = arith.constant 120 : i32
    %90 = tpu.dynamic_rotate %65 by %c120_i32_21 dim 1 : vector<8x128xf32>, i32 -> vector<8x128xf32>
    %91 = vector.extract_strided_slice %1 {offsets = [6, 0], sizes = [1, 128], strides = [1, 1]} : vector<8x128xf32> to vector<1x128xf32>
    %92 = vector.broadcast %91 : vector<1x128xf32> to vector<8x128xf32>
    %93 = arith.mulf %90, %92 : vector<8x128xf32>
    %c119_i32_22 = arith.constant 119 : i32
    %94 = tpu.dynamic_rotate %65 by %c119_i32_22 dim 1 : vector<8x128xf32>, i32 -> vector<8x128xf32>
    %95 = vector.extract_strided_slice %1 {offsets = [7, 0], sizes = [1, 128], strides = [1, 1]} : vector<8x128xf32> to vector<1x128xf32>
    %96 = vector.broadcast %95 : vector<1x128xf32> to vector<8x128xf32>
    %97 = arith.mulf %94, %96 : vector<8x128xf32>
    %98 = tpu.concatenate %69, %73, %77, %81, %65, %85, %89, %93, %97 in 0 : vector<8x128xf32>, vector<8x128xf32>, vector<8x128xf32>, vector<8x128xf32>, vector<8x128xf32>, vector<8x128xf32>, vector<8x128xf32>, vector<8x128xf32>, vector<8x128xf32> -> vector<72x128xf32>
    %99 = arith.truncf %98 : vector<72x128xf32> to vector<72x128xbf16>
    %c16 = arith.constant 16 : index
    %c0_23 = arith.constant 0 : index
    %100 = vector.load %arg2[%c16, %c0_23] : memref<48x72xbf16, #tpu.memory_space<vmem>>, vector<8x72xbf16>
    %cst_24 = arith.constant dense<0.000000e+00> : vector<8x128xf32>
    %101 = tpu.matmul %100, %99, %cst_24 {dimension_numbers = #tpu.dot_dimension_numbers<[1], [0], [0], [1], [0, 0, 1, 1], [], []>} : vector<8x72xbf16>, vector<72x128xbf16>, vector<8x128xf32> -> vector<8x128xf32>
    %c0_25 = arith.constant 0 : index
    %c2 = arith.constant 2 : index
    %102 = vector.load %arg3[%c0_25, %c2] : memref<8x6xf32, #tpu.memory_space<vmem>>, vector<8x1xf32>
    %103 = vector.broadcast %102 : vector<8x1xf32> to vector<8x128xf32>
    %104 = arith.addf %101, %103 : vector<8x128xf32>
    %cst_26 = arith.constant 0.000000e+00 : f32
    %105 = vector.broadcast %cst_26 : f32 to vector<8x128xf32>
    %106 = arith.maximumf %104, %105 : vector<8x128xf32>
    %c9_i32_27 = arith.constant 9 : i32
    %107 = tpu.dynamic_rotate %106 by %c9_i32_27 dim 1 : vector<8x128xf32>, i32 -> vector<8x128xf32>
    %108 = vector.extract_strided_slice %1 {offsets = [0, 0], sizes = [1, 128], strides = [1, 1]} : vector<8x128xf32> to vector<1x128xf32>
    %109 = vector.broadcast %108 : vector<1x128xf32> to vector<8x128xf32>
    %110 = arith.mulf %107, %109 : vector<8x128xf32>
    %c8_i32_28 = arith.constant 8 : i32
    %111 = tpu.dynamic_rotate %106 by %c8_i32_28 dim 1 : vector<8x128xf32>, i32 -> vector<8x128xf32>
    %112 = vector.extract_strided_slice %1 {offsets = [1, 0], sizes = [1, 128], strides = [1, 1]} : vector<8x128xf32> to vector<1x128xf32>
    %113 = vector.broadcast %112 : vector<1x128xf32> to vector<8x128xf32>
    %114 = arith.mulf %111, %113 : vector<8x128xf32>
    %c7_i32_29 = arith.constant 7 : i32
    %115 = tpu.dynamic_rotate %106 by %c7_i32_29 dim 1 : vector<8x128xf32>, i32 -> vector<8x128xf32>
    %116 = vector.extract_strided_slice %1 {offsets = [2, 0], sizes = [1, 128], strides = [1, 1]} : vector<8x128xf32> to vector<1x128xf32>
    %117 = vector.broadcast %116 : vector<1x128xf32> to vector<8x128xf32>
    %118 = arith.mulf %115, %117 : vector<8x128xf32>
    %c1_i32_30 = arith.constant 1 : i32
    %119 = tpu.dynamic_rotate %106 by %c1_i32_30 dim 1 : vector<8x128xf32>, i32 -> vector<8x128xf32>
    %120 = vector.extract_strided_slice %1 {offsets = [3, 0], sizes = [1, 128], strides = [1, 1]} : vector<8x128xf32> to vector<1x128xf32>
    %121 = vector.broadcast %120 : vector<1x128xf32> to vector<8x128xf32>
    %122 = arith.mulf %119, %121 : vector<8x128xf32>
    %c127_i32_31 = arith.constant 127 : i32
    %123 = tpu.dynamic_rotate %106 by %c127_i32_31 dim 1 : vector<8x128xf32>, i32 -> vector<8x128xf32>
    %124 = vector.extract_strided_slice %1 {offsets = [4, 0], sizes = [1, 128], strides = [1, 1]} : vector<8x128xf32> to vector<1x128xf32>
    %125 = vector.broadcast %124 : vector<1x128xf32> to vector<8x128xf32>
    %126 = arith.mulf %123, %125 : vector<8x128xf32>
    %c121_i32_32 = arith.constant 121 : i32
    %127 = tpu.dynamic_rotate %106 by %c121_i32_32 dim 1 : vector<8x128xf32>, i32 -> vector<8x128xf32>
    %128 = vector.extract_strided_slice %1 {offsets = [5, 0], sizes = [1, 128], strides = [1, 1]} : vector<8x128xf32> to vector<1x128xf32>
    %129 = vector.broadcast %128 : vector<1x128xf32> to vector<8x128xf32>
    %130 = arith.mulf %127, %129 : vector<8x128xf32>
    %c120_i32_33 = arith.constant 120 : i32
    %131 = tpu.dynamic_rotate %106 by %c120_i32_33 dim 1 : vector<8x128xf32>, i32 -> vector<8x128xf32>
    %132 = vector.extract_strided_slice %1 {offsets = [6, 0], sizes = [1, 128], strides = [1, 1]} : vector<8x128xf32> to vector<1x128xf32>
    %133 = vector.broadcast %132 : vector<1x128xf32> to vector<8x128xf32>
    %134 = arith.mulf %131, %133 : vector<8x128xf32>
    %c119_i32_34 = arith.constant 119 : i32
    %135 = tpu.dynamic_rotate %106 by %c119_i32_34 dim 1 : vector<8x128xf32>, i32 -> vector<8x128xf32>
    %136 = vector.extract_strided_slice %1 {offsets = [7, 0], sizes = [1, 128], strides = [1, 1]} : vector<8x128xf32> to vector<1x128xf32>
    %137 = vector.broadcast %136 : vector<1x128xf32> to vector<8x128xf32>
    %138 = arith.mulf %135, %137 : vector<8x128xf32>
    %139 = tpu.concatenate %110, %114, %118, %122, %106, %126, %130, %134, %138 in 0 : vector<8x128xf32>, vector<8x128xf32>, vector<8x128xf32>, vector<8x128xf32>, vector<8x128xf32>, vector<8x128xf32>, vector<8x128xf32>, vector<8x128xf32>, vector<8x128xf32> -> vector<72x128xf32>
    %140 = arith.truncf %139 : vector<72x128xf32> to vector<72x128xbf16>
    %c24 = arith.constant 24 : index
    %c0_35 = arith.constant 0 : index
    %141 = vector.load %arg2[%c24, %c0_35] : memref<48x72xbf16, #tpu.memory_space<vmem>>, vector<8x72xbf16>
    %cst_36 = arith.constant dense<0.000000e+00> : vector<8x128xf32>
    %142 = tpu.matmul %141, %140, %cst_36 {dimension_numbers = #tpu.dot_dimension_numbers<[1], [0], [0], [1], [0, 0, 1, 1], [], []>} : vector<8x72xbf16>, vector<72x128xbf16>, vector<8x128xf32> -> vector<8x128xf32>
    %c0_37 = arith.constant 0 : index
    %c3 = arith.constant 3 : index
    %143 = vector.load %arg3[%c0_37, %c3] : memref<8x6xf32, #tpu.memory_space<vmem>>, vector<8x1xf32>
    %144 = vector.broadcast %143 : vector<8x1xf32> to vector<8x128xf32>
    %145 = arith.addf %142, %144 : vector<8x128xf32>
    %146 = arith.addf %145, %65 : vector<8x128xf32>
    %cst_38 = arith.constant 0.000000e+00 : f32
    %147 = vector.broadcast %cst_38 : f32 to vector<8x128xf32>
    %148 = arith.maximumf %146, %147 : vector<8x128xf32>
    %149 = tpu.concatenate %65, %148, %10 in 0 : vector<8x128xf32>, vector<8x128xf32>, vector<4x128xf32> -> vector<20x128xf32>
    %150 = arith.truncf %149 : vector<20x128xf32> to vector<20x128xbf16>
    %c40 = arith.constant 40 : index
    %c0_39 = arith.constant 0 : index
    %151 = vector.load %arg2[%c40, %c0_39] : memref<48x72xbf16, #tpu.memory_space<vmem>>, vector<8x20xbf16>
    %cst_40 = arith.constant dense<0.000000e+00> : vector<8x128xf32>
    %152 = tpu.matmul %151, %150, %cst_40 {dimension_numbers = #tpu.dot_dimension_numbers<[1], [0], [0], [1], [0, 0, 1, 1], [], []>} : vector<8x20xbf16>, vector<20x128xbf16>, vector<8x128xf32> -> vector<8x128xf32>
    %c0_41 = arith.constant 0 : index
    %c5 = arith.constant 5 : index
    %153 = vector.load %arg3[%c0_41, %c5] : memref<8x6xf32, #tpu.memory_space<vmem>>, vector<8x1xf32>
    %154 = vector.broadcast %153 : vector<8x1xf32> to vector<8x128xf32>
    %155 = arith.addf %152, %154 : vector<8x128xf32>
    %c0_42 = arith.constant 0 : index
    %c0_43 = arith.constant 0 : index
    %156 = vector.load %arg4[%c0_42, %c0_43] : memref<8x128xf32, #tpu.memory_space<vmem>>, vector<8x128xf32>
    tpu.vector_store %arg4[%c0_42, %c0_43], %155 {strides = array<i32>} : memref<8x128xf32, #tpu.memory_space<vmem>>, vector<8x128xf32>,
    return
  }
}

</mosaic_0001>

<llo_original>
// kernel: _basic_tree_forward.1
$region0: #{_basic_tree_forward.1}
  #allocation0 [shape = 'u32[]', space=smem, size = 0x4, offset = 0x4, fixed_abs, tag = 'smem constant byte address 0x4 - core index']
  #allocation1 [shape = 'u32[72,128]{1,0:T(1,128)}', space=vmem, size = 0x9000, scoped, tag = 'internal scratch']
  %s0 = inlined_call_operand.vmem [shape: bf16[36,128], index: 0, kind: input, shape index: {}]
  %s1 = inlined_call_operand.vmem [shape: f32[8,128], index: 1, kind: input, shape index: {}]
  %s2 = inlined_call_operand.vmem [shape: bf16[48,72], index: 2, kind: input, shape index: {}]
  %s3 = inlined_call_operand.vmem [shape: f32[8,6], index: 3, kind: input, shape index: {}]
  %s4 = inlined_call_operand.vmem [shape: f32[8,128], index: 4, kind: output, shape index: {}]
  %s5 = sld [smem:[#allocation0]]
  $region26: #{_basic_tree_forward.1} parent=0
    _
  %s7 = ssub.s32 1, %s5
  %s8 = scalar_select 0, %s7, %s5
  // Predicated region
  $region2: #{_basic_tree_forward.1} parent=0 // pred_check
    _
  $region3: #{_basic_tree_forward.1} parent=0 // pred_check_branch
    %10 = sbr.rel (0) target = $region5
  $region4: #{_basic_tree_forward.1} parent=0 // pred_region
    _
  $region5: #{_basic_tree_forward.1} parent=0 // pred_fallthru
    _
  // Predicated region
  $region6: #{_basic_tree_forward.1} parent=0 // pred_check
    _
  $region7: #{_basic_tree_forward.1} parent=0 // pred_check_branch
    %12 = sbr.rel (0) target = $region9
  $region8: #{_basic_tree_forward.1} parent=0 // pred_region
    _
  $region9: #{_basic_tree_forward.1} parent=0 // pred_fallthru
    _
  // Predicated region
  $region10: #{_basic_tree_forward.1} parent=0 // pred_check
    _
  $region11: #{_basic_tree_forward.1} parent=0 // pred_check_branch
    %14 = sbr.rel (0) target = $region13
  $region12: #{_basic_tree_forward.1} parent=0 // pred_region
    _
  $region13: #{_basic_tree_forward.1} parent=0 // pred_fallthru
    _
  // Predicated region
  $region14: #{_basic_tree_forward.1} parent=0 // pred_check
    _
  $region15: #{_basic_tree_forward.1} parent=0 // pred_check_branch
    %16 = sbr.rel (0) target = $region17
  $region16: #{_basic_tree_forward.1} parent=0 // pred_region
    _
  $region17: #{_basic_tree_forward.1} parent=0 // pred_fallthru
    _
  %v18 = vld [vmem:[%s0] sm:$0xf]
  %v19 = vld [vmem:[%s0 + $0x4] sm:$0xf]
  %v20 = vld [vmem:[%s0 + $0x8] sm:$0xf]
  %v21 = vld [vmem:[%s0 + $0xc] sm:$0xf]
  %v22 = vld [vmem:[%s0 + $0x10] sm:$0x3]
  %v23 = vld [vmem:[%s1] sm:$0xff]
  %v24 = vunpack.c.l.bf16 %v18
  %v25 = vunpack.c.l.bf16 %v19
  %v27 = vrot.slane %v24, 4
  %v29 = vmax.f32 %v24, %v27
  %v31 = vrot.slane %v25, 4
  %v33 = vmax.f32 %v25, %v31
  %v34 = vmax.f32 %v29, %v33
  %v35 = vpack.c.bf16 %v34, %v34
  %v36 = vld [vmem:[%s2 + $0x10] sm:$0xf]
  %v37 = vld [vmem:[%s3] sm:$0xff]
  %39 = vset.pattern.permute.xlu0 4
  %40 = vperm.xlu0 %39, %v37
  %v41 = vpop.permute.xlu0 %40
  %vm43 = vcmask 31744
  %v45 = vsel %vm43, %v36, 0
  %vm47 = vcmask 1041408
  %v49 = vsel %vm47, %v35, 0
  %51 = vmatpush.bf16.msra.mxu0 0
  %52 = vmatpush.bf16.msra.mxu0 0
  %53 = vmatpush.bf16.msra.mxu0 0
  %54 = vmatpush.bf16.msra.mxu0 0
  %55 = vmatpush.bf16.msra.mxu0 0
  %56 = vmatpush.bf16.msra.mxu0 0
  %57 = vmatpush.bf16.msra.mxu0 0
  %58 = vmatpush.bf16.msra.mxu0 %v49
  %59 = vmatmul.bf16.gmra.mxu0 %v45
  %v60 = vpop.f32.mrf.mxu0
  %v61 = vadd.f32 %v41, %v60
  %v62 = vpop.f32.mrf.mxu0
  %63 = vdwg.mxu0
  %v64 = vld [vmem:[%s2] sm:$0xf]
  %65 = vset.pattern.permute.xlu0 0
  %66 = vperm.xlu0 %65, %v37
  %v67 = vpop.permute.xlu0 %66
  %v74 = vunpack.c.l.b16 %v18
  %v75 = vunpack.c.l.b16 %v19
  %v76 = vunpack.c.l.b16 %v20
  %v77 = vunpack.c.l.b16 %v21
  %v78 = vunpack.c.l.b16 %v22
  %v79 = vpack.c.b16 %v75, %v74
  %v80 = vpack.c.b16 %v77, %v76
  %v81 = vpack.c.b16 %v78, %v78
  %vm84 = vcmask 293888
  %v86 = vsel %vm84, %v64, 0
  %v89 = vsel %vm47, %v81, 0
  %91 = vmatpush.bf16.msra.mxu0 0
  %92 = vmatpush.bf16.msra.mxu0 0
  %93 = vmatpush.bf16.msra.mxu0 0
  %94 = vmatpush.bf16.msra.mxu0 0
  %95 = vmatpush.bf16.msra.mxu0 0
  %96 = vmatpush.bf16.msra.mxu0 %v89
  %97 = vmatpush.bf16.msra.mxu0 %v80
  %98 = vmatpush.bf16.msra.mxu0 %v79
  %99 = vmatmul.bf16.gmra.mxu0 %v86
  %v100 = vpop.f32.mrf.mxu0
  %v101 = vadd.f32 %v67, %v100
  %v102 = vpop.f32.mrf.mxu0
  %103 = vdwg.mxu0
  %v104 = vmax.f32 %v101, 0.0
  %105 = vrot.lane.b32.xlu0 %v104, 9
  %v106 = vpop.permute.xlu0 %105
  %v107 = vperm.slane %v23, 0
  %v108 = vmul.f32 %v106, %v107
  %109 = vrot.lane.b32.xlu0 %v104, 8
  %v110 = vpop.permute.xlu0 %109
  %v111 = vperm.slane %v23, 1
  %v112 = vmul.f32 %v110, %v111
  %113 = vrot.lane.b32.xlu0 %v104, 7
  %v114 = vpop.permute.xlu0 %113
  %v115 = vperm.slane %v23, 2
  %v116 = vmul.f32 %v114, %v115
  %117 = vrot.lane.b32.xlu0 %v104, 1
  %v118 = vpop.permute.xlu0 %117
  %v119 = vperm.slane %v23, 3
  %v120 = vmul.f32 %v118, %v119
  %121 = vrot.lane.b32.xlu0 %v104, 127
  %v122 = vpop.permute.xlu0 %121
  %v123 = vperm.slane %v23, 4
  %v124 = vmul.f32 %v122, %v123
  %125 = vrot.lane.b32.xlu0 %v104, 121
  %v126 = vpop.permute.xlu0 %125
  %v127 = vperm.slane %v23, 5
  %v128 = vmul.f32 %v126, %v127
  %129 = vrot.lane.b32.xlu0 %v104, 120
  %v130 = vpop.permute.xlu0 %129
  %v131 = vperm.slane %v23, 6
  %v132 = vmul.f32 %v130, %v131
  %133 = vrot.lane.b32.xlu0 %v104, 119
  %v134 = vpop.permute.xlu0 %133
  %v135 = vperm.slane %v23, 7
  %v136 = vmul.f32 %v134, %v135
  %v137 = vpack.c.bf16 %v112, %v108
  %v138 = vpack.c.bf16 %v120, %v116
  %v139 = vpack.c.bf16 %v124, %v104
  %v140 = vpack.c.bf16 %v132, %v128
  %v141 = vpack.c.bf16 %v136, %v136
  %v142 = vld [vmem:[%s2 + $0x4] sm:$0xf]
  %143 = vset.pattern.permute.xlu0 1
  %144 = vperm.xlu0 %143, %v37
  %v145 = vpop.permute.xlu0 %144
  %vm147 = vcmask 588800
  %v149 = vsel %vm147, %v142, 0
  %vm151 = vcmask 1043456
  %v153 = vsel %vm151, %v141, 0
  %155 = vmatpush.bf16.msra.mxu0 0
  %156 = vmatpush.bf16.msra.mxu0 0
  %157 = vmatpush.bf16.msra.mxu0 0
  %158 = vmatpush.bf16.msra.mxu0 %v153
  %159 = vmatpush.bf16.msra.mxu0 %v140
  %160 = vmatpush.bf16.msra.mxu0 %v139
  %161 = vmatpush.bf16.msra.mxu0 %v138
  %162 = vmatpush.bf16.msra.mxu0 %v137
  %163 = vmatmul.bf16.gmra.mxu0 %v149
  %v164 = vpop.f32.mrf.mxu0
  %v165 = vadd.f32 %v145, %v164
  %v166 = vpop.f32.mrf.mxu0
  %167 = vdwg.mxu0
  %v168 = vadd.f32 %v165, %v61
  %v169 = vmax.f32 %v168, 0.0
  %170 = vrot.lane.b32.xlu0 %v169, 9
  %v171 = vpop.permute.xlu0 %170
  %v172 = vmul.f32 %v171, %v107
  %173 = vrot.lane.b32.xlu0 %v169, 8
  %v174 = vpop.permute.xlu0 %173
  %v175 = vmul.f32 %v174, %v111
  %176 = vrot.lane.b32.xlu0 %v169, 7
  %v177 = vpop.permute.xlu0 %176
  %v178 = vmul.f32 %v177, %v115
  %179 = vrot.lane.b32.xlu0 %v169, 1
  %v180 = vpop.permute.xlu0 %179
  %v181 = vmul.f32 %v180, %v119
  %182 = vrot.lane.b32.xlu0 %v169, 127
  %v183 = vpop.permute.xlu0 %182
  %v184 = vmul.f32 %v183, %v123
  %185 = vrot.lane.b32.xlu0 %v169, 121
  %v186 = vpop.permute.xlu0 %185
  %v187 = vmul.f32 %v186, %v127
  %188 = vrot.lane.b32.xlu0 %v169, 120
  %v189 = vpop.permute.xlu0 %188
  %v190 = vmul.f32 %v189, %v131
  %191 = vrot.lane.b32.xlu0 %v169, 119
  %v192 = vpop.permute.xlu0 %191
  %v193 = vmul.f32 %v192, %v135
  %v194 = vpack.c.bf16 %v175, %v172
  %v195 = vpack.c.bf16 %v181, %v178
  %v196 = vpack.c.bf16 %v184, %v169
  %v197 = vpack.c.bf16 %v190, %v187
  %v198 = vpack.c.bf16 %v193, %v193
  %v199 = vld [vmem:[%s2 + $0x8] sm:$0xf]
  %200 = vset.pattern.permute.xlu0 2
  %201 = vperm.xlu0 %200, %v37
  %v202 = vpop.permute.xlu0 %201
  %v205 = vsel %vm147, %v199, 0
  %v208 = vsel %vm151, %v198, 0
  %210 = vmatpush.bf16.msra.mxu0 0
  %211 = vmatpush.bf16.msra.mxu0 0
  %212 = vmatpush.bf16.msra.mxu0 0
  %213 = vmatpush.bf16.msra.mxu0 %v208
  %214 = vmatpush.bf16.msra.mxu0 %v197
  %215 = vmatpush.bf16.msra.mxu0 %v196
  %216 = vmatpush.bf16.msra.mxu0 %v195
  %217 = vmatpush.bf16.msra.mxu0 %v194
  %218 = vmatmul.bf16.gmra.mxu0 %v205
  %v219 = vpop.f32.mrf.mxu0
  %v220 = vadd.f32 %v202, %v219
  %v221 = vpop.f32.mrf.mxu0
  %222 = vdwg.mxu0
  %v223 = vmax.f32 %v220, 0.0
  %224 = vrot.lane.b32.xlu0 %v223, 9
  %v225 = vpop.permute.xlu0 %224
  %v226 = vmul.f32 %v225, %v107
  %227 = vrot.lane.b32.xlu0 %v223, 8
  %v228 = vpop.permute.xlu0 %227
  %v229 = vmul.f32 %v228, %v111
  %230 = vrot.lane.b32.xlu0 %v223, 7
  %v231 = vpop.permute.xlu0 %230
  %v232 = vmul.f32 %v231, %v115
  %233 = vrot.lane.b32.xlu0 %v223, 1
  %v234 = vpop.permute.xlu0 %233
  %v235 = vmul.f32 %v234, %v119
  %236 = vrot.lane.b32.xlu0 %v223, 127
  %v237 = vpop.permute.xlu0 %236
  %v238 = vmul.f32 %v237, %v123
  %239 = vrot.lane.b32.xlu0 %v223, 121
  %v240 = vpop.permute.xlu0 %239
  %v241 = vmul.f32 %v240, %v127
  %242 = vrot.lane.b32.xlu0 %v223, 120
  %v243 = vpop.permute.xlu0 %242
  %v244 = vmul.f32 %v243, %v131
  %245 = vrot.lane.b32.xlu0 %v223, 119
  %v246 = vpop.permute.xlu0 %245
  %v247 = vmul.f32 %v246, %v135
  %v248 = vpack.c.bf16 %v229, %v226
  %v249 = vpack.c.bf16 %v235, %v232
  %v250 = vpack.c.bf16 %v238, %v223
  %v251 = vpack.c.bf16 %v244, %v241
  %v252 = vpack.c.bf16 %v247, %v247
  %v253 = vld [vmem:[%s2 + $0xc] sm:$0xf]
  %254 = vset.pattern.permute.xlu0 3
  %255 = vperm.xlu0 %254, %v37
  %v256 = vpop.permute.xlu0 %255
  %v259 = vsel %vm147, %v253, 0
  %v262 = vsel %vm151, %v252, 0
  %264 = vmatpush.bf16.msra.mxu0 0
  %265 = vmatpush.bf16.msra.mxu0 0
  %266 = vmatpush.bf16.msra.mxu0 0
  %267 = vmatpush.bf16.msra.mxu0 %v262
  %268 = vmatpush.bf16.msra.mxu0 %v251
  %269 = vmatpush.bf16.msra.mxu0 %v250
  %270 = vmatpush.bf16.msra.mxu0 %v249
  %271 = vmatpush.bf16.msra.mxu0 %v248
  %272 = vmatmul.bf16.gmra.mxu0 %v259
  %v273 = vpop.f32.mrf.mxu0
  %v274 = vadd.f32 %v256, %v273
  %v275 = vpop.f32.mrf.mxu0
  %276 = vdwg.mxu0
  %v277 = vadd.f32 %v274, %v169
  %v278 = vmax.f32 %v277, 0.0
  %v279 = vpack.c.bf16 %v278, %v169
  %v280 = vld [vmem:[%s2 + $0x14] sm:$0xf]
  %281 = vset.pattern.permute.xlu0 5
  %282 = vperm.xlu0 %281, %v37
  %v283 = vpop.permute.xlu0 %282
  %vm285 = vcmask 162816
  %v287 = vsel %vm285, %v280, 0
  %289 = vmatpush.bf16.msra.mxu0 0
  %290 = vmatpush.bf16.msra.mxu0 0
  %291 = vmatpush.bf16.msra.mxu0 0
  %292 = vmatpush.bf16.msra.mxu0 0
  %293 = vmatpush.bf16.msra.mxu0 0
  %294 = vmatpush.bf16.msra.mxu0 0
  %295 = vmatpush.bf16.msra.mxu0 %v49
  %296 = vmatpush.bf16.msra.mxu0 %v279
  %297 = vmatmul.bf16.gmra.mxu0 %v287
  %v298 = vpop.f32.mrf.mxu0
  %v299 = vadd.f32 %v283, %v298
  %v300 = vpop.f32.mrf.mxu0
  %301 = vdwg.mxu0
  %302 = vst [vmem:[%s4] sm:$0xff] %v299
  // Predicated region
  $region18: #{_basic_tree_forward.1} parent=0 // pred_check
    _
  $region19: #{_basic_tree_forward.1} parent=0 // pred_check_branch
    %304 = sbr.rel (0) target = $region21
  $region20: #{_basic_tree_forward.1} parent=0 // pred_region
    _
  $region21: #{_basic_tree_forward.1} parent=0 // pred_fallthru
    _
  // Predicated region
  $region22: #{_basic_tree_forward.1} parent=0 // pred_check
    _
  $region23: #{_basic_tree_forward.1} parent=0 // pred_check_branch
    %306 = sbr.rel (0) target = $region25
  $region24: #{_basic_tree_forward.1} parent=0 // pred_region
    _
  $region25: #{_basic_tree_forward.1} parent=0 // pred_fallthru
    _

</llo_original>
